<compile_context>
chip_gen: v7x
topology: tpu7x:2x2x1
jax: 0.10.0
libtpu: 0.0.40
codegen_flags: <defaults>
</compile_context>

<pallas_src>
import functools

import jax
import jax.numpy as jnp
from jax import lax
from jax.experimental import pallas as pl
from jax.experimental.pallas import tpu as pltpu


# ----------------------------------------------------------------- helpers ---
def _round_up(x, m):
    return ((x + m - 1) // m) * m


def _vmem_limit_bytes():
    """Per-generation VMEM budget: ~3/4 of physical capacity.

    v5e/v6e: 128 MiB physical -> 96 MiB budget; v7x: 64 MiB -> 48 MiB.
    Falls back to a v7x-safe 48 MiB if the query is unavailable.
    """
    cap = 64 * 1024 * 1024
    try:
        info = pltpu.get_tpu_info()
        cap = int(getattr(info, "vmem_capacity_bytes", cap))
    except Exception:
        pass
    cap = min(max(cap, 32 * 1024 * 1024), 128 * 1024 * 1024)
    return (cap // 4) * 3


def _tile_rows(n_rows, budget_bytes, per_row_bytes, zrow_bytes, override):
    """Row tile: multiple of 8 (or the full array), sized by the VMEM budget and
    an 8-MiB-per-z-buffer cap (review: 2-8 MiB tiles reach 85-90% of HBM roofline)."""
    if override is not None:
        t = int(override)
    else:
        t = min(max(budget_bytes, per_row_bytes) // per_row_bytes,
                max((8 << 20) // zrow_bytes, 1))
    if t >= n_rows:
        return n_rows
    return max(8, (t // 8) * 8)


# ---------------------------------------------------------------- phase 1 ----
def _score_sum_kernel(z_ref, w1b_ref, b1t_ref, acc_ref, *,
                      n_nodes, node_tile, inner_steps, needs_mask):
    """acc(1,1,M*H) += sum_rows tanh(z_tile @ kron(I_M, W1) + b1_tiled).

    Grid = (par, inner): `par` is the megacore ("parallel") split of the N
    reduction, the inner axis is the "arbitrary" reduction into the resident
    accumulator block.
    """
    @pl.when(pl.program_id(1) == 0)
    def _init():
        acc_ref[...] = jnp.zeros(acc_ref.shape, acc_ref.dtype)

    # (TN, M*D) @ (M*D, M*H) -> (TN, M*H): one lane-dense MXU dot, f32 accumulation.
    h = jnp.dot(z_ref[...], w1b_ref[...], preferred_element_type=jnp.float32)
    h = jnp.tanh(h + b1t_ref[...])  # EUP; b1 stays f32

    if needs_mask:
        # Zero rows past the logical N (partial last tile / duplicated clamped
        # tile on the megacore split) before they enter the sum.
        row0 = (pl.program_id(0) * inner_steps + pl.program_id(1)) * node_tile
        rows = row0 + lax.broadcasted_iota(jnp.int32, (node_tile, 1), 0)
        h = jnp.where(rows < n_nodes, h, 0.0)

    acc_ref[...] += jnp.sum(h, axis=0, keepdims=True)[None, :, :]


# ---------------------------------------------------------------- phase 2 ----
def _weighted_sum_kernel(z_ref, wb_ref, o_ref):
    """out_tile = z_tile(TR, M*D) @ W_beta(M*D, D); memory-bound on all gens."""
    o_ref[...] = jnp.dot(z_ref[...], wb_ref[...],
                         preferred_element_type=jnp.float32).astype(o_ref.dtype)


# ------------------------------------------------------------ fused (small) --
def _fused_kernel(z_ref, w1b_ref, b1t_ref, w2b_ref, rep_ref, sumsel_ref, o_ref, *,
                  n_nodes):
    """Single-launch path when z fits in VMEM: projection + mean + softmax + sum."""
    h = jnp.dot(z_ref[...], w1b_ref[...], preferred_element_type=jnp.float32)
    h = jnp.tanh(h + b1t_ref[...])                               # (N, M*H) f32
    hbar = jnp.sum(h, axis=0, keepdims=True) * (1.0 / n_nodes)   # (1, M*H)
    scores = jnp.dot(hbar, w2b_ref[...],
                     preferred_element_type=jnp.float32)         # (1, M)
    scores = scores - jnp.max(scores, axis=-1, keepdims=True)
    e = jnp.exp(scores)
    beta = e / jnp.sum(e, axis=-1, keepdims=True)                # (1, M)
    # Expand beta over the D columns of each type block: (1,M)@(M,M*D) -> (1,M*D).
    beta_exp = jnp.dot(beta, rep_ref[...], preferred_element_type=jnp.float32)
    zw = z_ref[...].astype(jnp.float32) * beta_exp               # (N, M*D)
    # Sum over node types: (N, M*D) @ (M*D, D) with stacked identities.
    o_ref[...] = jnp.dot(zw, sumsel_ref[...],
                         preferred_element_type=jnp.float32).astype(o_ref.dtype)


# ---------------------------------------------------------------- wrapper ----
def nodetype_attention(z, w1, b1, w2, *, force_two_phase=False,
                       node_tile_rows=None, out_tile_rows=None):
    """z: (N, M, D); w1: (D, H); b1: (H,); w2: (H, 1)  ->  (N, D).

    NOTE: matmul operands are kept in z.dtype (bf16-friendly) with f32 MXU
    accumulation; for non-f32 z the result differs from a pure-f32 reference
    only by input/weight rounding.
    """
    N, M, D = z.shape
    H = w1.shape[1]
    f32 = jnp.float32
    MD, MH = M * D, M * H
    itemsize = z.dtype.itemsize

    vmem_limit = _vmem_limit_bytes()
    usable = (vmem_limit * 3) // 4  # leave 25% headroom for compiler temporaries

    # Lane-dense row-major views / parameters (host-side, tiny).
    z_lane = z.reshape(N, MD)                                        # free view
    eye_m = jnp.eye(M, dtype=f32)
    w1_block = jnp.kron(eye_m, w1.astype(f32)).astype(z.dtype)       # (M*D, M*H)
    b1_tile = jnp.tile(b1.astype(f32).reshape(1, H), (1, M))         # (1, M*H) f32
    w2_block = jnp.kron(eye_m, w2.astype(f32))                       # (M*H, M) f32

    # VMEM per-row footprints (minor dim padded to 128 lanes).
    zrow = _round_up(MD, 128) * itemsize          # z tile row
    hrow = _round_up(MH, 128) * 4                 # f32 tanh intermediate row
    orow = _round_up(D, 128) * itemsize           # output tile row

    # ------------------- fused single-kernel path (z resident in VMEM) -------
    fused_bytes = N * (zrow + 2 * hrow + orow) \
        + 2 * (MD + MH + M) * max(_round_up(MH, 128), 128) * 4
    if (not force_two_phase) and fused_bytes <= (vmem_limit * 2) // 5:
        r_idx = jnp.arange(MD, dtype=jnp.int32)
        rep = (r_idx[None, :] // D ==
               jnp.arange(M, dtype=jnp.int32)[:, None]).astype(f32)     # (M, M*D)
        sumsel = (r_idx[:, None] % D ==
                  jnp.arange(D, dtype=jnp.int32)[None, :]).astype(f32)  # (M*D, D)
        kernel = functools.partial(_fused_kernel, n_nodes=N)
        return pl.pallas_call(
            kernel,
            out_shape=jax.ShapeDtypeStruct((N, D), z.dtype),
            grid=(1,),
            in_specs=[
                pl.BlockSpec((N, MD), lambda i: (0, 0)),
                pl.BlockSpec((MD, MH), lambda i: (0, 0)),
                pl.BlockSpec((1, MH), lambda i: (0, 0)),
                pl.BlockSpec((MH, M), lambda i: (0, 0)),
                pl.BlockSpec((M, MD), lambda i: (0, 0)),
                pl.BlockSpec((MD, D), lambda i: (0, 0)),
            ],
            out_specs=pl.BlockSpec((N, D), lambda i: (0, 0)),
            compiler_params=pltpu.CompilerParams(
                dimension_semantics=("arbitrary",),
                vmem_limit_bytes=vmem_limit,
            ),
        )(z_lane, w1_block, b1_tile, w2_block, rep, sumsel)

    # ---------------- phase 1: hbar = sum_n tanh(z @ W1 + b1), tiled over N ---
    fixed1 = 2 * MD * _round_up(MH, 128) * max(itemsize, 4) \
        + 16 * _round_up(MH, 128) * 4
    per_row1 = 2 * zrow + 2 * hrow                # 2 z buffers + h (+ one temp)
    tn = _tile_rows(N, usable - fixed1, per_row1, zrow, node_tile_rows)

    steps = pl.cdiv(N, tn)
    par = 2 if steps >= 2 else 1                  # megacore split of N reduction
    inner = pl.cdiv(steps, par)
    needs_mask = (N % tn != 0) or (par * inner != steps)
    last_blk = steps - 1

    p1_kernel = functools.partial(_score_sum_kernel, n_nodes=N, node_tile=tn,
                                  inner_steps=inner, needs_mask=needs_mask)

    def z_map1(c, i):
        # Clamp so the (rare) padded megacore step re-reads the last block; the
        # kernel masks its rows to zero, so it contributes nothing.
        return (jnp.minimum(c * inner + i, last_blk), 0)

    partials = pl.pallas_call(
        p1_kernel,
        out_shape=jax.ShapeDtypeStruct((par, 1, MH), f32),
        grid=(par, inner),
        in_specs=[
            pl.BlockSpec((tn, MD), z_map1),
            pl.BlockSpec((MD, MH), lambda c, i: (0, 0)),
            pl.BlockSpec((1, MH), lambda c, i: (0, 0)),
        ],
        out_specs=pl.BlockSpec((1, 1, MH), lambda c, i: (c, 0, 0)),
        compiler_params=pltpu.CompilerParams(
            dimension_semantics=("parallel", "arbitrary"),
            vmem_limit_bytes=vmem_limit,
        ),
    )(z_lane, w1_block, b1_tile)

    # ---- tiny (M, 1) softmax of the GLOBAL mean, in plain JAX ----------------
    h_sum = partials.sum(axis=(0, 1)).reshape(M, H)          # (M, H)
    w_mean = (h_sum / f32(N)) @ w2.astype(f32)               # (M, 1) == mean_n(h)@w2
    beta = jax.nn.softmax(w_mean, axis=0)[:, 0]              # (M,)

    # ---------------- phase 2: out[n] = sum_m beta[m] * z[n, m, :] ------------
    # One (TR, M*D) @ (M*D, D) matmul per tile against stacked beta-scaled
    # identities: lane-dense z reads, ~D/2 FLOP/byte (memory-bound incl. v5e f32).
    w_beta = (beta[:, None, None] * jnp.eye(D, dtype=f32)[None]).reshape(MD, D)
    w_beta = w_beta.astype(z.dtype)  # bf16 rounding of beta if z is bf16 (documented)

    fixed2 = 2 * MD * _round_up(D, 128) * max(itemsize, 4)
    per_row2 = 2 * zrow + 2 * orow
    tr = _tile_rows(N, usable - fixed2, per_row2, zrow, out_tile_rows)

    out = pl.pallas_call(
        _weighted_sum_kernel,
        out_shape=jax.ShapeDtypeStruct((N, D), z.dtype),
        grid=(pl.cdiv(N, tr),),
        in_specs=[
            pl.BlockSpec((tr, MD), lambda i: (i, 0)),
            pl.BlockSpec((MD, D), lambda i: (0, 0)),
        ],
        out_specs=pl.BlockSpec((tr, D), lambda i: (i, 0)),
        compiler_params=pltpu.CompilerParams(
            dimension_semantics=("parallel",),   # megacore-shardable streaming pass
            vmem_limit_bytes=vmem_limit,
        ),
    )(z_lane, w_beta)

    return out


# -------------------------------------------------------------- reference ----
def _reference(z, w1, b1, w2):
    w = jnp.tanh(z @ w1 + b1) @ w2          # (N, M, 1)
    w = w.mean(0)                           # (M, 1)
    beta = jax.nn.softmax(w, axis=0)        # (M, 1)
    beta = jnp.broadcast_to(beta, (z.shape[0],) + beta.shape)
    return (beta * z).sum(1)                # (N, D)


if __name__ == "__main__":
    # Small shapes consistent with the module: N nodes, M node types, in_size D.
    N, M, D, H = 8, 4, 32, 64

    key = jax.random.PRNGKey(0)
    kz, kw1, kb1, kw2, kz2 = jax.random.split(key, 5)

    z = jax.random.normal(kz, (N, M, D), dtype=jnp.float32)

    # Deterministic parameter init (PyTorch-Linear-style uniform bounds).
    bound1 = 1.0 / (D ** 0.5)
    w1 = jax.random.uniform(kw1, (D, H), jnp.float32, -bound1, bound1)
    b1 = jax.random.uniform(kb1, (H,), jnp.float32, -bound1, bound1)
    bound2 = 1.0 / (H ** 0.5)
    w2 = jax.random.uniform(kw2, (H, 1), jnp.float32, -bound2, bound2)

    # Path 1: fused single-kernel path (z resident in VMEM).
    fused_fn = jax.jit(nodetype_attention)
    out = jax.block_until_ready(fused_fn(z, w1, b1, w2))
    ref = _reference(z, w1, b1, w2)
    assert out.shape == (N, D)
    assert jnp.allclose(out, ref, atol=1e-4, rtol=1e-4), "fused path mismatch"

    # Path 2: tiled two-phase path; N=300 with 64-row tiles exercises partial
    # blocks, in-kernel masking and the megacore reduction split.
    N2 = 300
    z2 = jax.random.normal(kz2, (N2, M, D), dtype=jnp.float32)
    two_phase_fn = jax.jit(functools.partial(
        nodetype_attention, force_two_phase=True,
        node_tile_rows=64, out_tile_rows=64))
    out2 = jax.block_until_ready(two_phase_fn(z2, w1, b1, w2))
    ref2 = _reference(z2, w1, b1, w2)
    assert out2.shape == (N2, D)
    assert jnp.allclose(out2, ref2, atol=1e-4, rtol=1e-4), "two-phase path mismatch"

    print("KERNEL_OK")
</pallas_src>

<mosaic_0001>
module attributes {stable_mosaic.version = 11 : i64} {
  func.func @_fused_kernel(%arg0: i32, %arg1: memref<8x128xf32, #tpu.memory_space<vmem>>, %arg2: memref<128x256xf32, #tpu.memory_space<vmem>>, %arg3: memref<1x256xf32, #tpu.memory_space<vmem>>, %arg4: memref<256x4xf32, #tpu.memory_space<vmem>>, %arg5: memref<4x128xf32, #tpu.memory_space<vmem>>, %arg6: memref<128x32xf32, #tpu.memory_space<vmem>>, %arg7: memref<8x32xf32, #tpu.memory_space<vmem>>) attributes {dimension_semantics = [#tpu.dimension_semantics<arbitrary>], iteration_bounds = array<i64: 1>, scalar_prefetch = 0 : i64, scratch_operands = 0 : i64, tpu.core_type = #tpu.core_type<tc>, window_params = [{pipeline_mode = #tpu.pipeline_mode<synchronous>, transform_indices = @transform_0, window_bounds = array<i64: 8, 128>}, {pipeline_mode = #tpu.pipeline_mode<synchronous>, transform_indices = @transform_1, window_bounds = array<i64: 128, 256>}, {pipeline_mode = #tpu.pipeline_mode<synchronous>, transform_indices = @transform_2, window_bounds = array<i64: 1, 256>}, {pipeline_mode = #tpu.pipeline_mode<synchronous>, transform_indices = @transform_3, window_bounds = array<i64: 256, 4>}, {pipeline_mode = #tpu.pipeline_mode<synchronous>, transform_indices = @transform_4, window_bounds = array<i64: 4, 128>}, {pipeline_mode = #tpu.pipeline_mode<synchronous>, transform_indices = @transform_5, window_bounds = array<i64: 128, 32>}, {pipeline_mode = #tpu.pipeline_mode<synchronous>, transform_indices = @transform_6, window_bounds = array<i64: 8, 32>}]} {
    %c0 = arith.constant 0 : index
    %c0_0 = arith.constant 0 : index
    %0 = vector.load %arg1[%c0, %c0_0] : memref<8x128xf32, #tpu.memory_space<vmem>>, vector<8x128xf32>
    %c0_1 = arith.constant 0 : index
    %c0_2 = arith.constant 0 : index
    %1 = vector.load %arg2[%c0_1, %c0_2] : memref<128x256xf32, #tpu.memory_space<vmem>>, vector<128x256xf32>
    %cst = arith.constant dense<0.000000e+00> : vector<8x256xf32>
    %2 = tpu.matmul %0, %1, %cst {dimension_numbers = #tpu.dot_dimension_numbers<[1], [0], [0], [1], [0, 0, 1, 1], [], []>} : vector<8x128xf32>, vector<128x256xf32>, vector<8x256xf32> -> vector<8x256xf32>
    %c0_3 = arith.constant 0 : index
    %c0_4 = arith.constant 0 : index
    %3 = vector.load %arg3[%c0_3, %c0_4] : memref<1x256xf32, #tpu.memory_space<vmem>>, vector<1x256xf32>
    %4 = vector.broadcast %3 : vector<1x256xf32> to vector<8x256xf32>
    %5 = arith.addf %2, %4 : vector<8x256xf32>
    %6 = math.tanh %5 : vector<8x256xf32>
    %cst_5 = arith.constant dense<0.000000e+00> : vector<256xf32>
    %7 = vector.multi_reduction <add>, %6, %cst_5 [0] : vector<8x256xf32> to vector<256xf32>
    %8 = vector.shape_cast %7 : vector<256xf32> to vector<1x256xf32>
    %cst_6 = arith.constant 1.250000e-01 : f32
    %9 = vector.broadcast %cst_6 : f32 to vector<1x256xf32>
    %10 = arith.mulf %8, %9 : vector<1x256xf32>
    %c0_7 = arith.constant 0 : index
    %c0_8 = arith.constant 0 : index
    %11 = vector.load %arg4[%c0_7, %c0_8] : memref<256x4xf32, #tpu.memory_space<vmem>>, vector<256x4xf32>
    %cst_9 = arith.constant dense<0.000000e+00> : vector<1x4xf32>
    %12 = tpu.matmul %10, %11, %cst_9 {dimension_numbers = #tpu.dot_dimension_numbers<[1], [0], [0], [1], [0, 0, 1, 1], [], []>} : vector<1x256xf32>, vector<256x4xf32>, vector<1x4xf32> -> vector<1x4xf32>
    %cst_10 = arith.constant dense<0xFF800000> : vector<1xf32>
    %13 = vector.multi_reduction <maximumf>, %12, %cst_10 [1] : vector<1x4xf32> to vector<1xf32>
    %14 = vector.shape_cast %13 : vector<1xf32> to vector<1x1xf32>
    %15 = vector.broadcast %14 : vector<1x1xf32> to vector<1x4xf32>
    %16 = arith.subf %12, %15 : vector<1x4xf32>
    %17 = math.exp %16 : vector<1x4xf32>
    %cst_11 = arith.constant dense<0.000000e+00> : vector<1xf32>
    %18 = vector.multi_reduction <add>, %17, %cst_11 [1] : vector<1x4xf32> to vector<1xf32>
    %19 = vector.shape_cast %18 : vector<1xf32> to vector<1x1xf32>
    %20 = vector.broadcast %19 : vector<1x1xf32> to vector<1x4xf32>
    %21 = arith.divf %17, %20 : vector<1x4xf32>
    %c0_12 = arith.constant 0 : index
    %c0_13 = arith.constant 0 : index
    %22 = vector.load %arg5[%c0_12, %c0_13] : memref<4x128xf32, #tpu.memory_space<vmem>>, vector<4x128xf32>
    %cst_14 = arith.constant dense<0.000000e+00> : vector<1x128xf32>
    %23 = tpu.matmul %21, %22, %cst_14 {dimension_numbers = #tpu.dot_dimension_numbers<[1], [0], [0], [1], [0, 0, 1, 1], [], []>} : vector<1x4xf32>, vector<4x128xf32>, vector<1x128xf32> -> vector<1x128xf32>
    %c0_15 = arith.constant 0 : index
    %c0_16 = arith.constant 0 : index
    %24 = vector.load %arg1[%c0_15, %c0_16] : memref<8x128xf32, #tpu.memory_space<vmem>>, vector<8x128xf32>
    %25 = vector.broadcast %23 : vector<1x128xf32> to vector<8x128xf32>
    %26 = arith.mulf %24, %25 : vector<8x128xf32>
    %c0_17 = arith.constant 0 : index
    %c0_18 = arith.constant 0 : index
    %27 = vector.load %arg6[%c0_17, %c0_18] : memref<128x32xf32, #tpu.memory_space<vmem>>, vector<128x32xf32>
    %cst_19 = arith.constant dense<0.000000e+00> : vector<8x32xf32>
    %28 = tpu.matmul %26, %27, %cst_19 {dimension_numbers = #tpu.dot_dimension_numbers<[1], [0], [0], [1], [0, 0, 1, 1], [], []>} : vector<8x128xf32>, vector<128x32xf32>, vector<8x32xf32> -> vector<8x32xf32>
    %c0_20 = arith.constant 0 : index
    %c0_21 = arith.constant 0 : index
    %29 = vector.load %arg7[%c0_20, %c0_21] : memref<8x32xf32, #tpu.memory_space<vmem>>, vector<8x32xf32>
    tpu.vector_store %arg7[%c0_20, %c0_21], %28 {strides = array<i32>} : memref<8x32xf32, #tpu.memory_space<vmem>>, vector<8x32xf32>,
    return
  }
  func.func @transform_0(%arg0: i32) -> (i32, i32) {
    %c0_i32 = arith.constant 0 : i32
    %c0_i32_0 = arith.constant 0 : i32
    %c0_i32_1 = arith.constant 0 : i32
    return %c0_i32, %c0_i32_0 : i32, i32
  }
  func.func @transform_1(%arg0: i32) -> (i32, i32) {
    %c0_i32 = arith.constant 0 : i32
    %c0_i32_0 = arith.constant 0 : i32
    %c0_i32_1 = arith.constant 0 : i32
    return %c0_i32, %c0_i32_0 : i32, i32
  }
  func.func @transform_2(%arg0: i32) -> (i32, i32) {
    %c0_i32 = arith.constant 0 : i32
    %c0_i32_0 = arith.constant 0 : i32
    %c0_i32_1 = arith.constant 0 : i32
    return %c0_i32, %c0_i32_0 : i32, i32
  }
  func.func @transform_3(%arg0: i32) -> (i32, i32) {
    %c0_i32 = arith.constant 0 : i32
    %c0_i32_0 = arith.constant 0 : i32
    %c0_i32_1 = arith.constant 0 : i32
    return %c0_i32, %c0_i32_0 : i32, i32
  }
  func.func @transform_4(%arg0: i32) -> (i32, i32) {
    %c0_i32 = arith.constant 0 : i32
    %c0_i32_0 = arith.constant 0 : i32
    %c0_i32_1 = arith.constant 0 : i32
    return %c0_i32, %c0_i32_0 : i32, i32
  }
  func.func @transform_5(%arg0: i32) -> (i32, i32) {
    %c0_i32 = arith.constant 0 : i32
    %c0_i32_0 = arith.constant 0 : i32
    %c0_i32_1 = arith.constant 0 : i32
    return %c0_i32, %c0_i32_0 : i32, i32
  }
  func.func @transform_6(%arg0: i32) -> (i32, i32) {
    %c0_i32 = arith.constant 0 : i32
    %c0_i32_0 = arith.constant 0 : i32
    %c0_i32_1 = arith.constant 0 : i32
    return %c0_i32, %c0_i32_0 : i32, i32
  }
}

</mosaic_0001>

<llo_original>
// kernel: nodetype_attention.1
$region0: #{nodetype_attention.1}
  #allocation0 [shape = 'u32[]', space=smem, size = 0x4, offset = 0x4, fixed_abs, tag = 'smem constant byte address 0x4 - core index']
  #allocation1 [shape = 'u32[144,128]{1,0:T(1,128)}', space=vmem, size = 0x12000, scoped, tag = 'internal scratch']
  %s0 = inlined_call_operand.vmem [shape: f32[8,128], index: 0, kind: input, shape index: {}]
  %s1 = inlined_call_operand.vmem [shape: f32[128,256], index: 1, kind: input, shape index: {}]
  %s2 = inlined_call_operand.vmem [shape: f32[1,256], index: 2, kind: input, shape index: {}]
  %s3 = inlined_call_operand.vmem [shape: f32[256,4], index: 3, kind: input, shape index: {}]
  %s4 = inlined_call_operand.vmem [shape: f32[4,128], index: 4, kind: input, shape index: {}]
  %s5 = inlined_call_operand.vmem [shape: f32[128,32], index: 5, kind: input, shape index: {}]
  %s6 = inlined_call_operand.hbm [shape: f32[8,32], index: 6, kind: output, shape index: {}]
  %s7 = sld [smem:[#allocation0]]
  $region34: #{nodetype_attention.1} parent=0
    _
  %s9 = ssub.s32 1, %s7
  %s10 = scalar_select 0, %s9, %s7
  $region1: #{nodetype_attention.1} parent=0
    #allocation2 [shape = 'u8[4096]{0}', space=vmem, size = 0x1000, scoped, tag = 'output window, operand 0, single buffered']
    #allocation3 [shape = 's32[1]{0}', space=sflag, size = 0x4, scoped, tag = 'scoped memory for nodetype_attention.1']
    %11 = vsyncpa [#allocation3], 0
    // Predicated region
    $region2: #{nodetype_attention.1} parent=1 // pred_check
      _
    $region3: #{nodetype_attention.1} parent=1 // pred_check_branch
      %13 = sbr.rel (0) target = $region5
    $region4: #{nodetype_attention.1} parent=1 // pred_region
      _
    $region5: #{nodetype_attention.1} parent=1 // pred_fallthru
      _
    // Predicated region
    $region6: #{nodetype_attention.1} parent=1 // pred_check
      _
    $region7: #{nodetype_attention.1} parent=1 // pred_check_branch
      %15 = sbr.rel (0) target = $region9
    $region8: #{nodetype_attention.1} parent=1 // pred_region
      _
    $region9: #{nodetype_attention.1} parent=1 // pred_fallthru
      _
    // Predicated region
    $region10: #{nodetype_attention.1} parent=1 // pred_check
      _
    $region11: #{nodetype_attention.1} parent=1 // pred_check_branch
      %17 = sbr.rel (0) target = $region13
    $region12: #{nodetype_attention.1} parent=1 // pred_region
      _
    $region13: #{nodetype_attention.1} parent=1 // pred_fallthru
      _
    // Predicated region
    $region14: #{nodetype_attention.1} parent=1 // pred_check
      _
    $region15: #{nodetype_attention.1} parent=1 // pred_check_branch
      %19 = sbr.rel (0) target = $region17
    $region16: #{nodetype_attention.1} parent=1 // pred_region
      _
    $region17: #{nodetype_attention.1} parent=1 // pred_fallthru
      _
    // Predicated region
    $region18: #{nodetype_attention.1} parent=1 // pred_check
      _
    $region19: #{nodetype_attention.1} parent=1 // pred_check_branch
      %21 = sbr.rel (0) target = $region21
    $region20: #{nodetype_attention.1} parent=1 // pred_region
      _
    $region21: #{nodetype_attention.1} parent=1 // pred_fallthru
      _
    // Predicated region
    $region22: #{nodetype_attention.1} parent=1 // pred_check
      _
    $region23: #{nodetype_attention.1} parent=1 // pred_check_branch
      %23 = sbr.rel (0) target = $region25
    $region24: #{nodetype_attention.1} parent=1 // pred_region
      _
    $region25: #{nodetype_attention.1} parent=1 // pred_fallthru
      _
    %v24 = vld [vmem:[%s0] sm:$0xff]
    %v25 = vld [vmem:[%s1] sm:$0xff]
    %v26 = vld [vmem:[%s1 + $0x8] sm:$0xff]
    %v27 = vld [vmem:[%s1 + $0x10] sm:$0xff]
    %v28 = vld [vmem:[%s1 + $0x18] sm:$0xff]
    %v29 = vld [vmem:[%s1 + $0x20] sm:$0xff]
    %v30 = vld [vmem:[%s1 + $0x28] sm:$0xff]
    %v31 = vld [vmem:[%s1 + $0x30] sm:$0xff]
    %v32 = vld [vmem:[%s1 + $0x38] sm:$0xff]
    %v33 = vld [vmem:[%s1 + $0x40] sm:$0xff]
    %v34 = vld [vmem:[%s1 + $0x48] sm:$0xff]
    %v35 = vld [vmem:[%s1 + $0x50] sm:$0xff]
    %v36 = vld [vmem:[%s1 + $0x58] sm:$0xff]
    %v37 = vld [vmem:[%s1 + $0x60] sm:$0xff]
    %v38 = vld [vmem:[%s1 + $0x68] sm:$0xff]
    %v39 = vld [vmem:[%s1 + $0x70] sm:$0xff]
    %v40 = vld [vmem:[%s1 + $0x78] sm:$0xff]
    %v41 = vld [vmem:[%s1 + $0x80] sm:$0xff]
    %v42 = vld [vmem:[%s1 + $0x88] sm:$0xff]
    %v43 = vld [vmem:[%s1 + $0x90] sm:$0xff]
    %v44 = vld [vmem:[%s1 + $0x98] sm:$0xff]
    %v45 = vld [vmem:[%s1 + $0xa0] sm:$0xff]
    %v46 = vld [vmem:[%s1 + $0xa8] sm:$0xff]
    %v47 = vld [vmem:[%s1 + $0xb0] sm:$0xff]
    %v48 = vld [vmem:[%s1 + $0xb8] sm:$0xff]
    %v49 = vld [vmem:[%s1 + $0xc0] sm:$0xff]
    %v50 = vld [vmem:[%s1 + $0xc8] sm:$0xff]
    %v51 = vld [vmem:[%s1 + $0xd0] sm:$0xff]
    %v52 = vld [vmem:[%s1 + $0xd8] sm:$0xff]
    %v53 = vld [vmem:[%s1 + $0xe0] sm:$0xff]
    %v54 = vld [vmem:[%s1 + $0xe8] sm:$0xff]
    %v55 = vld [vmem:[%s1 + $0xf0] sm:$0xff]
    %v56 = vld [vmem:[%s1 + $0xf8] sm:$0xff]
    %v57 = vld [vmem:[%s2] sm:$0x3]
    %v59 = vlaneseq
    %v60 = vshrl.u32 %v59, 7
    %v61 = vsub.s32 0, %v60
    %v62 = vrot.slane %v57, %v61
    %v63 = vlaneseq
    %v64 = vshrl.u32 %v63, 7
    %v65 = vsub.s32 1, %v64
    %v66 = vrot.slane %v57, %v65
    %69 = vmatprep.subr.mxu0 %v26
    %70 = vmatpush1.msra.mxu0 %v25
    %71 = vmatprep.subr.mxu0 %v28
    %72 = vmatpush1.msra.mxu0 %v27
    %73 = vmatprep.subr.mxu0 %v30
    %74 = vmatpush1.msra.mxu0 %v29
    %75 = vmatprep.subr.mxu0 %v32
    %76 = vmatpush1.msra.mxu0 %v31
    %77 = vmatprep.subr.mxu0 %v34
    %78 = vmatpush1.msra.mxu0 %v33
    %79 = vmatprep.subr.mxu0 %v36
    %80 = vmatpush1.msra.mxu0 %v35
    %81 = vmatprep.subr.mxu0 %v38
    %82 = vmatpush1.msra.mxu0 %v37
    %83 = vmatprep.subr.mxu0 %v40
    %84 = vmatpush1.msra.mxu0 %v39
    %85 = vmatprep.subr.mxu0 %v42
    %86 = vmatpush1.msra.mxu0 %v41
    %87 = vmatprep.subr.mxu0 %v44
    %88 = vmatpush1.msra.mxu0 %v43
    %89 = vmatprep.subr.mxu0 %v46
    %90 = vmatpush1.msra.mxu0 %v45
    %91 = vmatprep.subr.mxu0 %v48
    %92 = vmatpush1.msra.mxu0 %v47
    %93 = vmatprep.subr.mxu0 %v50
    %94 = vmatpush1.msra.mxu0 %v49
    %95 = vmatprep.subr.mxu0 %v52
    %96 = vmatpush1.msra.mxu0 %v51
    %97 = vmatprep.subr.mxu0 %v54
    %98 = vmatpush1.msra.mxu0 %v53
    %99 = vmatprep.subr.mxu0 %v56
    %100 = vmatpush1.msra.mxu0 %v55
    %101 = vmatprep.subr.mxu0 0.0
    %102 = vmatpush1.msra.mxu0 0.0
    %103 = vmatprep.subr.mxu0 0.0
    %104 = vmatpush1.msra.mxu0 0.0
    %105 = vmatprep.subr.mxu0 0.0
    %106 = vmatpush1.msra.mxu0 0.0
    %107 = vmatprep.subr.mxu0 0.0
    %108 = vmatpush1.msra.mxu0 0.0
    %109 = vmatprep.subr.mxu0 0.0
    %110 = vmatpush1.msra.mxu0 0.0
    %111 = vmatprep.subr.mxu0 0.0
    %112 = vmatpush1.msra.mxu0 0.0
    %113 = vmatprep.subr.mxu0 0.0
    %114 = vmatpush1.msra.mxu0 0.0
    %115 = vmatprep.subr.mxu0 0.0
    %116 = vmatpush1.msra.mxu0 0.0
    %117 = vmatprep.subr.mxu0 0.0
    %118 = vmatpush1.msra.mxu0 0.0
    %119 = vmatprep.subr.mxu0 0.0
    %120 = vmatpush1.msra.mxu0 0.0
    %121 = vmatprep.subr.mxu0 0.0
    %122 = vmatpush1.msra.mxu0 0.0
    %123 = vmatprep.subr.mxu0 0.0
    %124 = vmatpush1.msra.mxu0 0.0
    %125 = vmatprep.subr.mxu0 0.0
    %126 = vmatpush1.msra.mxu0 0.0
    %127 = vmatprep.subr.mxu0 0.0
    %128 = vmatpush1.msra.mxu0 0.0
    %129 = vmatprep.subr.mxu0 0.0
    %130 = vmatpush1.msra.mxu0 0.0
    %131 = vmatprep.subr.mxu0 0.0
    %132 = vmatpush1.msra.mxu0 0.0
    %133 = vmatprep.mubr.f32.mxu0 0.0
    %134 = vmatmul.mubr.f32.gmra.mrb[0].mxu0 %v24
    %v135 = vpop.f32.mrb[0].mxu0
    %v136 = vadd.f32 %v62, %v135
    %v137 = vpop.f32.mrb[0].mxu0
    %v138 = vadd.f32 %v66, %v137
    %139 = vdwg.mxu0
    %v140 = vtanh.pop %v136
    %v141 = vtanh.pop %v138
    %v142 = vrot.slane %v140, 4
    %v143 = vadd.f32 %v140, %v142
    %v144 = vrot.slane %v143, 2
    %v145 = vadd.f32 %v143, %v144
    %v146 = vrot.slane %v145, 1
    %v147 = vadd.f32 %v145, %v146
    %v148 = vrot.slane %v141, 4
    %v149 = vadd.f32 %v141, %v148
    %v150 = vrot.slane %v149, 2
    %v151 = vadd.f32 %v149, %v150
    %v152 = vrot.slane %v151, 1
    %v153 = vadd.f32 %v151, %v152
    %v154 = vmul.f32 %v147, 0.125
    %v155 = vmul.f32 %v153, 0.125
    %v156 = vld [vmem:[%s3] sm:$0xff]
    %v157 = vld [vmem:[%s3 + $0x8] sm:$0xff]
    %v158 = vld [vmem:[%s3 + $0x10] sm:$0xff]
    %v159 = vld [vmem:[%s3 + $0x18] sm:$0xff]
    %v160 = vld [vmem:[%s3 + $0x20] sm:$0xff]
    %v161 = vld [vmem:[%s3 + $0x28] sm:$0xff]
    %v162 = vld [vmem:[%s3 + $0x30] sm:$0xff]
    %v163 = vld [vmem:[%s3 + $0x38] sm:$0xff]
    %v164 = vld [vmem:[%s3 + $0x40] sm:$0xff]
    %v165 = vld [vmem:[%s3 + $0x48] sm:$0xff]
    %v166 = vld [vmem:[%s3 + $0x50] sm:$0xff]
    %v167 = vld [vmem:[%s3 + $0x58] sm:$0xff]
    %v168 = vld [vmem:[%s3 + $0x60] sm:$0xff]
    %v169 = vld [vmem:[%s3 + $0x68] sm:$0xff]
    %v170 = vld [vmem:[%s3 + $0x70] sm:$0xff]
    %v171 = vld [vmem:[%s3 + $0x78] sm:$0xff]
    %v172 = vld [vmem:[%s3 + $0x80] sm:$0xff]
    %v173 = vld [vmem:[%s3 + $0x88] sm:$0xff]
    %v174 = vld [vmem:[%s3 + $0x90] sm:$0xff]
    %v175 = vld [vmem:[%s3 + $0x98] sm:$0xff]
    %v176 = vld [vmem:[%s3 + $0xa0] sm:$0xff]
    %v177 = vld [vmem:[%s3 + $0xa8] sm:$0xff]
    %v178 = vld [vmem:[%s3 + $0xb0] sm:$0xff]
    %v179 = vld [vmem:[%s3 + $0xb8] sm:$0xff]
    %v180 = vld [vmem:[%s3 + $0xc0] sm:$0xff]
    %v181 = vld [vmem:[%s3 + $0xc8] sm:$0xff]
    %v182 = vld [vmem:[%s3 + $0xd0] sm:$0xff]
    %v183 = vld [vmem:[%s3 + $0xd8] sm:$0xff]
    %v184 = vld [vmem:[%s3 + $0xe0] sm:$0xff]
    %v185 = vld [vmem:[%s3 + $0xe8] sm:$0xff]
    %v186 = vld [vmem:[%s3 + $0xf0] sm:$0xff]
    %v187 = vld [vmem:[%s3 + $0xf8] sm:$0xff]
    %188 = vmatprep.subr.mxu0 0.0
    %189 = vmatpush1.msra.mxu0 %v156
    %190 = vmatprep.subr.mxu0 0.0
    %191 = vmatpush1.msra.mxu0 %v157
    %192 = vmatprep.subr.mxu0 0.0
    %193 = vmatpush1.msra.mxu0 %v158
    %194 = vmatprep.subr.mxu0 0.0
    %195 = vmatpush1.msra.mxu0 %v159
    %196 = vmatprep.subr.mxu0 0.0
    %197 = vmatpush1.msra.mxu0 %v160
    %198 = vmatprep.subr.mxu0 0.0
    %199 = vmatpush1.msra.mxu0 %v161
    %200 = vmatprep.subr.mxu0 0.0
    %201 = vmatpush1.msra.mxu0 %v162
    %202 = vmatprep.subr.mxu0 0.0
    %203 = vmatpush1.msra.mxu0 %v163
    %204 = vmatprep.subr.mxu0 0.0
    %205 = vmatpush1.msra.mxu0 %v164
    %206 = vmatprep.subr.mxu0 0.0
    %207 = vmatpush1.msra.mxu0 %v165
    %208 = vmatprep.subr.mxu0 0.0
    %209 = vmatpush1.msra.mxu0 %v166
    %210 = vmatprep.subr.mxu0 0.0
    %211 = vmatpush1.msra.mxu0 %v167
    %212 = vmatprep.subr.mxu0 0.0
    %213 = vmatpush1.msra.mxu0 %v168
    %214 = vmatprep.subr.mxu0 0.0
    %215 = vmatpush1.msra.mxu0 %v169
    %216 = vmatprep.subr.mxu0 0.0
    %217 = vmatpush1.msra.mxu0 %v170
    %218 = vmatprep.subr.mxu0 0.0
    %219 = vmatpush1.msra.mxu0 %v171
    %220 = vmatprep.subr.mxu0 0.0
    %221 = vmatpush1.msra.mxu0 %v172
    %222 = vmatprep.subr.mxu0 0.0
    %223 = vmatpush1.msra.mxu0 %v173
    %224 = vmatprep.subr.mxu0 0.0
    %225 = vmatpush1.msra.mxu0 %v174
    %226 = vmatprep.subr.mxu0 0.0
    %227 = vmatpush1.msra.mxu0 %v175
    %228 = vmatprep.subr.mxu0 0.0
    %229 = vmatpush1.msra.mxu0 %v176
    %230 = vmatprep.subr.mxu0 0.0
    %231 = vmatpush1.msra.mxu0 %v177
    %232 = vmatprep.subr.mxu0 0.0
    %233 = vmatpush1.msra.mxu0 %v178
    %234 = vmatprep.subr.mxu0 0.0
    %235 = vmatpush1.msra.mxu0 %v179
    %236 = vmatprep.subr.mxu0 0.0
    %237 = vmatpush1.msra.mxu0 %v180
    %238 = vmatprep.subr.mxu0 0.0
    %239 = vmatpush1.msra.mxu0 %v181
    %240 = vmatprep.subr.mxu0 0.0
    %241 = vmatpush1.msra.mxu0 %v182
    %242 = vmatprep.subr.mxu0 0.0
    %243 = vmatpush1.msra.mxu0 %v183
    %244 = vmatprep.subr.mxu0 0.0
    %245 = vmatpush1.msra.mxu0 %v184
    %246 = vmatprep.subr.mxu0 0.0
    %247 = vmatpush1.msra.mxu0 %v185
    %248 = vmatprep.subr.mxu0 0.0
    %249 = vmatpush1.msra.mxu0 %v186
    %250 = vmatprep.subr.mxu0 0.0
    %251 = vmatpush1.msra.mxu0 %v187
    %252 = vmatprep.mubr.f32.mxu0 %v155
    %253 = vmatmul.mubr.f32.gmra.mrb[0].mxu0 %v154
    %v254 = vpop.f32.mrb[0].mxu0
    %v255 = vadd.f32 0.0, %v254
    %v256 = vpop.f32.mrb[0].mxu0
    %257 = vdwg.mxu0
    %vm258 = vcmask 24576
    %v259 = vsel %vm258, %v255, -inf
    %260 = vmax.xlane.f32.xlu0 %v259
    %v261 = vpop.xlane.xlu0 %260
    %v262 = vsub.f32 %v255, %v261
    %v263 = vmul.f32 %v262, 1.442695
    %v264 = vpow.pop %v263
    %v265 = vsel %vm258, %v264, 0.0
    %266 = vadd.xlane.f32.xlu0 %v265
    %v267 = vpop.xlane.xlu0 %266
    %v268 = vrcp.pop %v267
    %v269 = vmul.f32 %v264, %v268
    %v270 = vld [vmem:[%s4] sm:$0xf]
    %vm271 = vcmask 31744
    %v273 = vsel %vm271, %v269, 0
    %vm275 = vcmask 1043456
    %v277 = vsel %vm275, %v270, 0
    %279 = vmatprep.subr.mxu0 0.0
    %280 = vmatpush1.msra.mxu0 %v277
    %281 = vmatprep.subr.mxu0 0.0
    %282 = vmatpush1.msra.mxu0 0.0
    %283 = vmatprep.subr.mxu0 0.0
    %284 = vmatpush1.msra.mxu0 0.0
    %285 = vmatprep.subr.mxu0 0.0
    %286 = vmatpush1.msra.mxu0 0.0
    %287 = vmatprep.subr.mxu0 0.0
    %288 = vmatpush1.msra.mxu0 0.0
    %289 = vmatprep.subr.mxu0 0.0
    %290 = vmatpush1.msra.mxu0 0.0
    %291 = vmatprep.subr.mxu0 0.0
    %292 = vmatpush1.msra.mxu0 0.0
    %293 = vmatprep.subr.mxu0 0.0
    %294 = vmatpush1.msra.mxu0 0.0
    %295 = vmatprep.subr.mxu0 0.0
    %296 = vmatpush1.msra.mxu0 0.0
    %297 = vmatprep.subr.mxu0 0.0
    %298 = vmatpush1.msra.mxu0 0.0
    %299 = vmatprep.subr.mxu0 0.0
    %300 = vmatpush1.msra.mxu0 0.0
    %301 = vmatprep.subr.mxu0 0.0
    %302 = vmatpush1.msra.mxu0 0.0
    %303 = vmatprep.subr.mxu0 0.0
    %304 = vmatpush1.msra.mxu0 0.0
    %305 = vmatprep.subr.mxu0 0.0
    %306 = vmatpush1.msra.mxu0 0.0
    %307 = vmatprep.subr.mxu0 0.0
    %308 = vmatpush1.msra.mxu0 0.0
    %309 = vmatprep.subr.mxu0 0.0
    %310 = vmatpush1.msra.mxu0 0.0
    %311 = vmatprep.subr.mxu0 0.0
    %312 = vmatpush1.msra.mxu0 0.0
    %313 = vmatprep.subr.mxu0 0.0
    %314 = vmatpush1.msra.mxu0 0.0
    %315 = vmatprep.subr.mxu0 0.0
    %316 = vmatpush1.msra.mxu0 0.0
    %317 = vmatprep.subr.mxu0 0.0
    %318 = vmatpush1.msra.mxu0 0.0
    %319 = vmatprep.subr.mxu0 0.0
    %320 = vmatpush1.msra.mxu0 0.0
    %321 = vmatprep.subr.mxu0 0.0
    %322 = vmatpush1.msra.mxu0 0.0
    %323 = vmatprep.subr.mxu0 0.0
    %324 = vmatpush1.msra.mxu0 0.0
    %325 = vmatprep.subr.mxu0 0.0
    %326 = vmatpush1.msra.mxu0 0.0
    %327 = vmatprep.subr.mxu0 0.0
    %328 = vmatpush1.msra.mxu0 0.0
    %329 = vmatprep.subr.mxu0 0.0
    %330 = vmatpush1.msra.mxu0 0.0
    %331 = vmatprep.subr.mxu0 0.0
    %332 = vmatpush1.msra.mxu0 0.0
    %333 = vmatprep.subr.mxu0 0.0
    %334 = vmatpush1.msra.mxu0 0.0
    %335 = vmatprep.subr.mxu0 0.0
    %336 = vmatpush1.msra.mxu0 0.0
    %337 = vmatprep.subr.mxu0 0.0
    %338 = vmatpush1.msra.mxu0 0.0
    %339 = vmatprep.subr.mxu0 0.0
    %340 = vmatpush1.msra.mxu0 0.0
    %341 = vmatprep.subr.mxu0 0.0
    %342 = vmatpush1.msra.mxu0 0.0
    %343 = vmatprep.mubr.f32.mxu0 0.0
    %344 = vmatmul.mubr.f32.gmra.mrb[0].mxu0 %v273
    %v345 = vpop.f32.mrb[0].mxu0
    %v346 = vadd.f32 0.0, %v345
    %v347 = vpop.f32.mrb[0].mxu0
    %348 = vdwg.mxu0
    %v349 = vlaneseq
    %v350 = vshrl.u32 %v349, 7
    %v351 = vsub.s32 0, %v350
    %v352 = vrot.slane %v346, %v351
    %v353 = vmul.f32 %v24, %v352
    %v354 = vld [vmem:[%s5] sm:$0xff]
    %v355 = vld [vmem:[%s5 + $0x8] sm:$0xff]
    %v356 = vld [vmem:[%s5 + $0x10] sm:$0xff]
    %v357 = vld [vmem:[%s5 + $0x18] sm:$0xff]
    %v358 = vld [vmem:[%s5 + $0x20] sm:$0xff]
    %v359 = vld [vmem:[%s5 + $0x28] sm:$0xff]
    %v360 = vld [vmem:[%s5 + $0x30] sm:$0xff]
    %v361 = vld [vmem:[%s5 + $0x38] sm:$0xff]
    %v362 = vld [vmem:[%s5 + $0x40] sm:$0xff]
    %v363 = vld [vmem:[%s5 + $0x48] sm:$0xff]
    %v364 = vld [vmem:[%s5 + $0x50] sm:$0xff]
    %v365 = vld [vmem:[%s5 + $0x58] sm:$0xff]
    %v366 = vld [vmem:[%s5 + $0x60] sm:$0xff]
    %v367 = vld [vmem:[%s5 + $0x68] sm:$0xff]
    %v368 = vld [vmem:[%s5 + $0x70] sm:$0xff]
    %v369 = vld [vmem:[%s5 + $0x78] sm:$0xff]
    %370 = vmatprep.subr.mxu0 0.0
    %371 = vmatpush1.msra.mxu0 %v354
    %372 = vmatprep.subr.mxu0 0.0
    %373 = vmatpush1.msra.mxu0 %v355
    %374 = vmatprep.subr.mxu0 0.0
    %375 = vmatpush1.msra.mxu0 %v356
    %376 = vmatprep.subr.mxu0 0.0
    %377 = vmatpush1.msra.mxu0 %v357
    %378 = vmatprep.subr.mxu0 0.0
    %379 = vmatpush1.msra.mxu0 %v358
    %380 = vmatprep.subr.mxu0 0.0
    %381 = vmatpush1.msra.mxu0 %v359
    %382 = vmatprep.subr.mxu0 0.0
    %383 = vmatpush1.msra.mxu0 %v360
    %384 = vmatprep.subr.mxu0 0.0
    %385 = vmatpush1.msra.mxu0 %v361
    %386 = vmatprep.subr.mxu0 0.0
    %387 = vmatpush1.msra.mxu0 %v362
    %388 = vmatprep.subr.mxu0 0.0
    %389 = vmatpush1.msra.mxu0 %v363
    %390 = vmatprep.subr.mxu0 0.0
    %391 = vmatpush1.msra.mxu0 %v364
    %392 = vmatprep.subr.mxu0 0.0
    %393 = vmatpush1.msra.mxu0 %v365
    %394 = vmatprep.subr.mxu0 0.0
    %395 = vmatpush1.msra.mxu0 %v366
    %396 = vmatprep.subr.mxu0 0.0
    %397 = vmatpush1.msra.mxu0 %v367
    %398 = vmatprep.subr.mxu0 0.0
    %399 = vmatpush1.msra.mxu0 %v368
    %400 = vmatprep.subr.mxu0 0.0
    %401 = vmatpush1.msra.mxu0 %v369
    %402 = vmatprep.subr.mxu0 0.0
    %403 = vmatpush1.msra.mxu0 0.0
    %404 = vmatprep.subr.mxu0 0.0
    %405 = vmatpush1.msra.mxu0 0.0
    %406 = vmatprep.subr.mxu0 0.0
    %407 = vmatpush1.msra.mxu0 0.0
    %408 = vmatprep.subr.mxu0 0.0
    %409 = vmatpush1.msra.mxu0 0.0
    %410 = vmatprep.subr.mxu0 0.0
    %411 = vmatpush1.msra.mxu0 0.0
    %412 = vmatprep.subr.mxu0 0.0
    %413 = vmatpush1.msra.mxu0 0.0
    %414 = vmatprep.subr.mxu0 0.0
    %415 = vmatpush1.msra.mxu0 0.0
    %416 = vmatprep.subr.mxu0 0.0
    %417 = vmatpush1.msra.mxu0 0.0
    %418 = vmatprep.subr.mxu0 0.0
    %419 = vmatpush1.msra.mxu0 0.0
    %420 = vmatprep.subr.mxu0 0.0
    %421 = vmatpush1.msra.mxu0 0.0
    %422 = vmatprep.subr.mxu0 0.0
    %423 = vmatpush1.msra.mxu0 0.0
    %424 = vmatprep.subr.mxu0 0.0
    %425 = vmatpush1.msra.mxu0 0.0
    %426 = vmatprep.subr.mxu0 0.0
    %427 = vmatpush1.msra.mxu0 0.0
    %428 = vmatprep.subr.mxu0 0.0
    %429 = vmatpush1.msra.mxu0 0.0
    %430 = vmatprep.subr.mxu0 0.0
    %431 = vmatpush1.msra.mxu0 0.0
    %432 = vmatprep.subr.mxu0 0.0
    %433 = vmatpush1.msra.mxu0 0.0
    %434 = vmatprep.mubr.f32.mxu0 0.0
    %435 = vmatmul.mubr.f32.gmra.mrb[0].mxu0 %v353
    %v436 = vpop.f32.mrb[0].mxu0
    %v437 = vadd.f32 0.0, %v436
    %v438 = vpop.f32.mrb[0].mxu0
    %439 = vdwg.mxu0
    %vm440 = vcmask 261120
    %441 = vst.msk [vmem:[#allocation2] sm:$0xff] %vm440, %v437
    // Predicated region
    $region26: #{nodetype_attention.1} parent=1 // pred_check
      _
    $region27: #{nodetype_attention.1} parent=1 // pred_check_branch
      %443 = sbr.rel (0) target = $region29
    $region28: #{nodetype_attention.1} parent=1 // pred_region
      %s445 = ssub.s32 128, 128
      %446 = vsyncadd [#allocation3], %s445
      %s448 = sshll.u32 [#allocation2], 4
      %s449 = int_to_ptr.vmem [resolvable:$true] %s448
      %451 = dma.vmem_to_hbm [thread:$0]  %s449, 128, %s6, [#allocation3]
    $region29: #{nodetype_attention.1} parent=1 // pred_fallthru
      _
    // Predicated region
    $region30: #{nodetype_attention.1} parent=1 // pred_check
      _
    $region31: #{nodetype_attention.1} parent=1 // pred_check_branch
      %453 = sbr.rel (0) target = $region33
    $region32: #{nodetype_attention.1} parent=1 // pred_region
      %454 = dma.done [#allocation3], 128
    $region33: #{nodetype_attention.1} parent=1 // pred_fallthru
      _
    %455 = vsyncpa [#allocation3], 1

</llo_original>
